<compile_context>
chip_gen: v5e
topology: v5e:2x2
jax: 0.10.0
libtpu: 0.0.40
codegen_flags: <defaults>
</compile_context>

<pallas_src>
import functools

import jax
import jax.numpy as jnp
from jax.experimental import pallas as pl
from jax.experimental.pallas import tpu as pltpu

LANES = 128
ROW_TILE = 1024   # rows per block; (1024, 128) f32 block = 512 KiB
MAX_CORES = 2     # leading "parallel" grid axis (both TCs on v7x; loop on 1-TC chips)


def _iou_partial_kernel(x_ref, t_ref, inter_ref, total_ref, *,
                        rows_total, steps_per_core, needs_mask):
    """Accumulates per-core lane-wise partial sums of sigmoid(x)*t and sigmoid(x)+t."""
    c = pl.program_id(0)  # core slot (parallel)
    i = pl.program_id(1)  # step within this core's chunk (arbitrary / reduction)

    @pl.when(i == 0)
    def _():
        inter_ref[...] = jnp.zeros_like(inter_ref)
        total_ref[...] = jnp.zeros_like(total_ref)

    x = jax.nn.sigmoid(x_ref[...].astype(jnp.float32))   # EUP
    t = t_ref[...].astype(jnp.float32)

    inter_blk = x * t
    total_blk = x + t

    if needs_mask:
        # Mask rows past the end of the logical input (partial last block and
        # fully out-of-range blocks re-fetched by the clamped index_map).
        bt = x_ref.shape[0]                      # rows in this block (static)
        block_idx = c * steps_per_core + i       # un-clamped logical block id
        remaining = rows_total - block_idx * bt  # valid rows left for this block
        row_id = jax.lax.broadcasted_iota(jnp.int32, (bt, LANES), 0)
        mask = row_id < remaining
        inter_blk = jnp.where(mask, inter_blk, 0.0)
        total_blk = jnp.where(mask, total_blk, 0.0)

    # Reduce only along sublanes (XLU); keep 128 lane partials in the accumulator.
    inter_ref[...] += jnp.sum(inter_blk, axis=0, keepdims=True).reshape(1, 1, LANES)
    total_ref[...] += jnp.sum(total_blk, axis=0, keepdims=True).reshape(1, 1, LANES)


def iou_pallas(inputs, targets, smooth=1.0):
    """Equivalent of IoU.forward(inputs, targets, smooth). Returns f32 scalar."""
    x_flat = jnp.ravel(inputs)   # same element order as torch .view(-1)
    t_flat = jnp.ravel(targets)
    n = x_flat.shape[0]

    rows = n // LANES
    main = rows * LANES
    tail = n - main

    # Tail (< 128 elements): negligible, handled in plain JAX.
    if tail:
        xt = jax.nn.sigmoid(x_flat[main:].astype(jnp.float32))
        tt = t_flat[main:].astype(jnp.float32)
        tail_inter = jnp.sum(xt * tt)
        tail_total = jnp.sum(xt + tt)
    else:
        tail_inter = jnp.float32(0.0)
        tail_total = jnp.float32(0.0)

    if rows == 0:
        inter = tail_inter
        total = tail_total
    else:
        x_main = x_flat if tail == 0 else x_flat[:main]
        t_main = t_flat if tail == 0 else t_flat[:main]
        x2 = x_main.reshape(rows, LANES)
        t2 = t_main.reshape(rows, LANES)

        row_tile = min(ROW_TILE, rows)              # full-dim block if input is small
        blocks_total = pl.cdiv(rows, row_tile)
        ncores = min(MAX_CORES, blocks_total)       # no wasted masked step on tiny inputs
        steps_per_core = pl.cdiv(blocks_total, ncores)
        last_block = blocks_total - 1

        # Mask only if the last block is partial or the padded grid overshoots.
        needs_mask = (rows % row_tile != 0) or (ncores * steps_per_core != blocks_total)

        def in_map(c, i):
            # Clamp so fully-out-of-range steps re-fetch a valid block; their
            # contribution is zeroed by the in-kernel row mask (needs_mask case).
            return (jnp.minimum(c * steps_per_core + i, last_block), 0)

        kernel = functools.partial(
            _iou_partial_kernel,
            rows_total=rows,
            steps_per_core=steps_per_core,
            needs_mask=needs_mask,
        )

        inter_part, total_part = pl.pallas_call(
            kernel,
            out_shape=(
                jax.ShapeDtypeStruct((ncores, 1, LANES), jnp.float32),
                jax.ShapeDtypeStruct((ncores, 1, LANES), jnp.float32),
            ),
            grid_spec=pltpu.PrefetchScalarGridSpec(
                num_scalar_prefetch=0,
                grid=(ncores, steps_per_core),
                in_specs=[
                    pl.BlockSpec((row_tile, LANES), in_map),
                    pl.BlockSpec((row_tile, LANES), in_map),
                ],
                out_specs=[
                    pl.BlockSpec((1, 1, LANES), lambda c, i: (c, 0, 0)),
                    pl.BlockSpec((1, 1, LANES), lambda c, i: (c, 0, 0)),
                ],
            ),
            compiler_params=pltpu.CompilerParams(
                dimension_semantics=("parallel", "arbitrary"),
            ),
        )(x2, t2)

        inter = jnp.sum(inter_part) + tail_inter
        total = jnp.sum(total_part) + tail_total

    union = total - inter
    s = jnp.float32(smooth)
    return (inter + s) / (union + s)


def iou_ref(inputs, targets, smooth=1.0):
    x = jax.nn.sigmoid(inputs.astype(jnp.float32)).ravel()
    t = targets.astype(jnp.float32).ravel()
    inter = jnp.sum(x * t)
    total = jnp.sum(x + t)
    union = total - inter
    return (inter + smooth) / (union + smooth)


if __name__ == "__main__":
    key = jax.random.PRNGKey(0)
    k1, k2 = jax.random.split(key)
    # Small shapes consistent with a segmentation logits/mask pair (NCHW).
    inputs = jax.random.normal(k1, (2, 4, 16, 16), dtype=jnp.float32)
    targets = (jax.random.uniform(k2, (2, 4, 16, 16)) > 0.5).astype(jnp.float32)

    out = iou_pallas(inputs, targets, smooth=1.0)
    jax.block_until_ready(out)

    ref = iou_ref(inputs, targets, smooth=1.0)
    assert jnp.allclose(out, ref, rtol=1e-5, atol=1e-5), (out, ref)
    print("KERNEL_OK")
</pallas_src>

<mosaic_0001>
module attributes {stable_mosaic.version = 11 : i64} {
  func.func @_iou_partial_kernel(%arg0: i32, %arg1: i32, %arg2: memref<16x128xf32, #tpu.memory_space<vmem>>, %arg3: memref<16x128xf32, #tpu.memory_space<vmem>>, %arg4: memref<1x1x128xf32, #tpu.memory_space<vmem>>, %arg5: memref<1x1x128xf32, #tpu.memory_space<vmem>>) attributes {dimension_semantics = [#tpu.dimension_semantics<parallel>, #tpu.dimension_semantics<arbitrary>], iteration_bounds = array<i64: 1, 1>, scalar_prefetch = 0 : i64, scratch_operands = 0 : i64, tpu.core_type = #tpu.core_type<tc>, window_params = [{transform_indices = @transform_0, window_bounds = array<i64: 16, 128>}, {transform_indices = @transform_1, window_bounds = array<i64: 16, 128>}, {transform_indices = @transform_2, window_bounds = array<i64: 1, 1, 128>}, {transform_indices = @transform_3, window_bounds = array<i64: 1, 1, 128>}]} {
    %c0_i32 = arith.constant 0 : i32
    %0 = arith.cmpi eq, %arg1, %c0_i32 : i32
    %1 = arith.extui %0 : i1 to i32
    %c0_i32_0 = arith.constant 0 : i32
    %2 = arith.cmpi ne, %1, %c0_i32_0 : i32
    scf.if %2 {
      %cst_18 = arith.constant 0.000000e+00 : f32
      %24 = vector.broadcast %cst_18 : f32 to vector<1x1x128xf32>
      %c0_19 = arith.constant 0 : index
      %c0_20 = arith.constant 0 : index
      %c0_21 = arith.constant 0 : index
      %25 = vector.load %arg4[%c0_19, %c0_20, %c0_21] : memref<1x1x128xf32, #tpu.memory_space<vmem>>, vector<1x1x128xf32>
      tpu.vector_store %arg4[%c0_19, %c0_20, %c0_21], %24 {strides = array<i32>} : memref<1x1x128xf32, #tpu.memory_space<vmem>>, vector<1x1x128xf32>,
      %cst_22 = arith.constant 0.000000e+00 : f32
      %26 = vector.broadcast %cst_22 : f32 to vector<1x1x128xf32>
      %c0_23 = arith.constant 0 : index
      %c0_24 = arith.constant 0 : index
      %c0_25 = arith.constant 0 : index
      %27 = vector.load %arg5[%c0_23, %c0_24, %c0_25] : memref<1x1x128xf32, #tpu.memory_space<vmem>>, vector<1x1x128xf32>
      tpu.vector_store %arg5[%c0_23, %c0_24, %c0_25], %26 {strides = array<i32>} : memref<1x1x128xf32, #tpu.memory_space<vmem>>, vector<1x1x128xf32>,
    } else {
    }
    %c0 = arith.constant 0 : index
    %c0_1 = arith.constant 0 : index
    %3 = vector.load %arg2[%c0, %c0_1] : memref<16x128xf32, #tpu.memory_space<vmem>>, vector<16x128xf32>
    %4 = arith.negf %3 : vector<16x128xf32>
    %5 = math.exp %4 : vector<16x128xf32>
    %cst = arith.constant 1.000000e+00 : f32
    %6 = vector.broadcast %cst : f32 to vector<16x128xf32>
    %7 = arith.addf %6, %5 : vector<16x128xf32>
    %8 = arith.divf %6, %7 : vector<16x128xf32>
    %c0_2 = arith.constant 0 : index
    %c0_3 = arith.constant 0 : index
    %9 = vector.load %arg3[%c0_2, %c0_3] : memref<16x128xf32, #tpu.memory_space<vmem>>, vector<16x128xf32>
    %10 = arith.mulf %8, %9 : vector<16x128xf32>
    %11 = arith.addf %8, %9 : vector<16x128xf32>
    %c0_4 = arith.constant 0 : index
    %c0_5 = arith.constant 0 : index
    %c0_6 = arith.constant 0 : index
    %12 = vector.load %arg4[%c0_4, %c0_5, %c0_6] : memref<1x1x128xf32, #tpu.memory_space<vmem>>, vector<1x1x128xf32>
    %cst_7 = arith.constant dense<0.000000e+00> : vector<128xf32>
    %13 = vector.multi_reduction <add>, %10, %cst_7 [0] : vector<16x128xf32> to vector<128xf32>
    %14 = vector.shape_cast %13 : vector<128xf32> to vector<1x128xf32>
    %15 = vector.shape_cast %14 : vector<1x128xf32> to vector<1x1x128xf32>
    %16 = arith.addf %12, %15 : vector<1x1x128xf32>
    %c0_8 = arith.constant 0 : index
    %c0_9 = arith.constant 0 : index
    %c0_10 = arith.constant 0 : index
    %17 = vector.load %arg4[%c0_8, %c0_9, %c0_10] : memref<1x1x128xf32, #tpu.memory_space<vmem>>, vector<1x1x128xf32>
    tpu.vector_store %arg4[%c0_8, %c0_9, %c0_10], %16 {strides = array<i32>} : memref<1x1x128xf32, #tpu.memory_space<vmem>>, vector<1x1x128xf32>,
    %c0_11 = arith.constant 0 : index
    %c0_12 = arith.constant 0 : index
    %c0_13 = arith.constant 0 : index
    %18 = vector.load %arg5[%c0_11, %c0_12, %c0_13] : memref<1x1x128xf32, #tpu.memory_space<vmem>>, vector<1x1x128xf32>
    %cst_14 = arith.constant dense<0.000000e+00> : vector<128xf32>
    %19 = vector.multi_reduction <add>, %11, %cst_14 [0] : vector<16x128xf32> to vector<128xf32>
    %20 = vector.shape_cast %19 : vector<128xf32> to vector<1x128xf32>
    %21 = vector.shape_cast %20 : vector<1x128xf32> to vector<1x1x128xf32>
    %22 = arith.addf %18, %21 : vector<1x1x128xf32>
    %c0_15 = arith.constant 0 : index
    %c0_16 = arith.constant 0 : index
    %c0_17 = arith.constant 0 : index
    %23 = vector.load %arg5[%c0_15, %c0_16, %c0_17] : memref<1x1x128xf32, #tpu.memory_space<vmem>>, vector<1x1x128xf32>
    tpu.vector_store %arg5[%c0_15, %c0_16, %c0_17], %22 {strides = array<i32>} : memref<1x1x128xf32, #tpu.memory_space<vmem>>, vector<1x1x128xf32>,
    return
  }
  func.func @transform_0(%arg0: i32, %arg1: i32) -> (i32, i32) {
    %c1_i32 = arith.constant 1 : i32
    %0 = arith.muli %arg0, %c1_i32 : i32
    %1 = arith.addi %0, %arg1 : i32
    %c0_i32 = arith.constant 0 : i32
    %2 = arith.minsi %1, %c0_i32 : i32
    %c0_i32_0 = arith.constant 0 : i32
    %c0_i32_1 = arith.constant 0 : i32
    return %2, %c0_i32_0 : i32, i32
  }
  func.func @transform_1(%arg0: i32, %arg1: i32) -> (i32, i32) {
    %c1_i32 = arith.constant 1 : i32
    %0 = arith.muli %arg0, %c1_i32 : i32
    %1 = arith.addi %0, %arg1 : i32
    %c0_i32 = arith.constant 0 : i32
    %2 = arith.minsi %1, %c0_i32 : i32
    %c0_i32_0 = arith.constant 0 : i32
    %c0_i32_1 = arith.constant 0 : i32
    return %2, %c0_i32_0 : i32, i32
  }
  func.func @transform_2(%arg0: i32, %arg1: i32) -> (i32, i32, i32) {
    %c0_i32 = arith.constant 0 : i32
    %c0_i32_0 = arith.constant 0 : i32
    %c0_i32_1 = arith.constant 0 : i32
    return %arg0, %c0_i32, %c0_i32_0 : i32, i32, i32
  }
  func.func @transform_3(%arg0: i32, %arg1: i32) -> (i32, i32, i32) {
    %c0_i32 = arith.constant 0 : i32
    %c0_i32_0 = arith.constant 0 : i32
    %c0_i32_1 = arith.constant 0 : i32
    return %arg0, %c0_i32, %c0_i32_0 : i32, i32, i32
  }
}

</mosaic_0001>

<llo_original>
// kernel: tpu_custom_call.1
$region0: #{tpu_custom_call.1}
  #allocation0 [shape = 'u32[]', space=smem, size = 0x4, offset = 0x4, fixed_abs, tag = 'smem constant byte address 0x4 - core index']
  #allocation1 [shape = 'u32[72,128]{1,0:T(1,128)}', space=vmem, size = 0x9000, scoped, tag = 'internal scratch']
  %s0 = inlined_call_operand.hbm [shape: f32[16,128], index: 0, kind: input, shape index: {}]
  %s1 = inlined_call_operand.hbm [shape: f32[16,128], index: 1, kind: input, shape index: {}]
  %s2 = inlined_call_operand.hbm [shape: f32[1,1,128], index: 2, kind: output, shape index: {0}]
  %s3 = inlined_call_operand.hbm [shape: f32[1,1,128], index: 3, kind: output, shape index: {1}]
  %4 = xla_tuple %s2, %s3
  %s5 = sld [smem:[#allocation0]]
  $region38: #{tpu_custom_call.1} parent=0
    _
  %s7 = ssub.s32 1, %s5
  %s8 = scalar_select 0, %s7, %s5
  $region1: #{tpu_custom_call.1} parent=0
    #allocation2 [shape = 'u8[8192]{0}', space=vmem, size = 0x2000, scoped, tag = 'input window, operand 0, single buffered']
    #allocation3 [shape = 's32[1]{0}', space=sflag, size = 0x4, scoped, tag = 'scoped memory for tpu_custom_call.1']
    #allocation4 [shape = 's32[1]{0}', space=sflag, size = 0x4, scoped, tag = 'scoped memory for tpu_custom_call.1']
    #allocation5 [shape = 'u8[8192]{0}', space=vmem, size = 0x2000, scoped, tag = 'input window, operand 1, single buffered']
    #allocation6 [shape = 's32[1]{0}', space=sflag, size = 0x4, scoped, tag = 'scoped memory for tpu_custom_call.1']
    #allocation7 [shape = 'u8[512]{0}', space=vmem, size = 0x400, scoped, tag = 'output window, operand 0, single buffered']
    #allocation8 [shape = 'u8[512]{0}', space=vmem, size = 0x400, scoped, tag = 'output window, operand 1, single buffered']
    #allocation9 [shape = 's32[1]{0}', space=sflag, size = 0x4, scoped, tag = 'scoped memory for tpu_custom_call.1']
    %9 = vsyncpa [#allocation3], 0
    %10 = vsyncpa [#allocation6], 0
    %11 = vsyncpa [#allocation4], 0
    %12 = vsyncpa [#allocation9], 0
    // Predicated region
    $region2: #{tpu_custom_call.1} parent=1 // pred_check
      _
    $region3: #{tpu_custom_call.1} parent=1 // pred_check_branch
      %14 = sbr.rel (0) target = $region5
    $region4: #{tpu_custom_call.1} parent=1 // pred_region
      %s15 = sadd.s32 0, 0
      %p16 = scmp.lt.s32.totalorder %s15, 0
      %s17 = scalar_select %p16, %s15, 0
      %s18 = smul.u32 2, %s17
      %20 = vsyncadd [#allocation3], 0
      %s21 = smul.addr %s18, 8
      %s22 = scalar_lea.hbm %s0, %s21
      %s23 = sshll.u32 %s22, 4
      %s24 = int_to_ptr.hbm [resolvable:$true] %s23
      %s25 = sshll.u32 [#allocation2], 4
      %s26 = int_to_ptr.vmem [resolvable:$true] %s25
      %31 = dma.hbm_to_vmem [thread:$0]  %s24, 256, %s26, [#allocation3], 128, 128, 8
    $region5: #{tpu_custom_call.1} parent=1 // pred_fallthru
      _
    // Predicated region
    $region6: #{tpu_custom_call.1} parent=1 // pred_check
      _
    $region7: #{tpu_custom_call.1} parent=1 // pred_check_branch
      %33 = sbr.rel (0) target = $region9
    $region8: #{tpu_custom_call.1} parent=1 // pred_region
      %s34 = sadd.s32 0, 0
      %p35 = scmp.lt.s32.totalorder %s34, 0
      %s36 = scalar_select %p35, %s34, 0
      %s37 = smul.u32 2, %s36
      %39 = vsyncadd [#allocation6], 0
      %s40 = smul.addr %s37, 8
      %s41 = scalar_lea.hbm %s1, %s40
      %s42 = sshll.u32 %s41, 4
      %s43 = int_to_ptr.hbm [resolvable:$true] %s42
      %s44 = sshll.u32 [#allocation5], 4
      %s45 = int_to_ptr.vmem [resolvable:$true] %s44
      %50 = dma.hbm_to_vmem [thread:$0]  %s43, 256, %s45, [#allocation6], 128, 128, 8
    $region9: #{tpu_custom_call.1} parent=1 // pred_fallthru
      _
    // Predicated region
    $region10: #{tpu_custom_call.1} parent=1 // pred_check
      _
    $region11: #{tpu_custom_call.1} parent=1 // pred_check_branch
      %52 = sbr.rel (0) target = $region13
    $region12: #{tpu_custom_call.1} parent=1 // pred_region
      %54 = dma.done [#allocation3], 256
    $region13: #{tpu_custom_call.1} parent=1 // pred_fallthru
      _
    // Predicated region
    $region14: #{tpu_custom_call.1} parent=1 // pred_check
      _
    $region15: #{tpu_custom_call.1} parent=1 // pred_check_branch
      %56 = sbr.rel (0) target = $region17
    $region16: #{tpu_custom_call.1} parent=1 // pred_region
      %58 = dma.done [#allocation6], 256
    $region17: #{tpu_custom_call.1} parent=1 // pred_fallthru
      _
    %s59 = sadd.s32 0, 0
    %p60 = scmp.lt.s32.totalorder %s59, 0
    %s61 = scalar_select %p60, %s59, 0
    %s62 = smul.u32 2, %s61
    %s63 = sadd.s32 0, 0
    %p64 = scmp.lt.s32.totalorder %s63, 0
    %s65 = scalar_select %p64, %s63, 0
    %s66 = smul.u32 2, %s65
    %p67 = scmp.eq.s32.totalorder 0, 0
    // Predicated region
    $region18: #{tpu_custom_call.1} parent=1 // pred_check
      %p68 = pneg %p67
    $region19: #{tpu_custom_call.1} parent=1 // pred_check_branch
      %70 = sbr.rel (%p68) target = $region21
    $region20: #{tpu_custom_call.1} parent=1 // pred_region
      %71 = vst [vmem:[#allocation7] sm:$0x1] 0.0
      %72 = vst [vmem:[#allocation8] sm:$0x1] 0.0
    $region21: #{tpu_custom_call.1} parent=1 // pred_fallthru
      _
    %v73 = vld [vmem:[#allocation2] sm:$0xff]
    %v74 = vld [vmem:[#allocation2 + $0x8] sm:$0xff]
    %v75 = vxor.u32 %v73, 2147483648
    %v76 = vxor.u32 %v74, 2147483648
    %v77 = vmul.f32 %v75, 1.442695
    %v78 = vpow.pop %v77
    %v79 = vmul.f32 %v76, 1.442695
    %v80 = vpow.pop %v79
    %v81 = vadd.f32 %v78, 1.0
    %v82 = vadd.f32 %v80, 1.0
    %v83 = vrcp.pop %v81
    %v84 = vmul.f32 %v81, %v83
    %v85 = vsub.f32 1.0, %v84
    %v86 = vmul.f32 %v83, %v85
    %v87 = vadd.f32 %v83, %v86
    %vm88 = vweird.f32 %v81
    %vm89 = vweird.f32 %v83
    %vm90 = vmor %vm88, %vm89
    %v91 = vsel %vm90, %v83, %v87
    %v92 = vand.u32 2147483647, %v81
    %vm93 = vcmp.eq.f32.partialorder %v92, 8.507059e+37
    %v94 = vand.u32 %v81, 2147483648
    %v95 = vor.u32 1.1754944e-38, %v94
    %v96 = vsel %vm93, %v95, %v91
    %v97 = vmul.f32 1.0, %v96
    %v98 = vrcp.pop %v82
    %v99 = vmul.f32 %v82, %v98
    %v100 = vsub.f32 1.0, %v99
    %v101 = vmul.f32 %v98, %v100
    %v102 = vadd.f32 %v98, %v101
    %vm103 = vweird.f32 %v82
    %vm104 = vweird.f32 %v98
    %vm105 = vmor %vm103, %vm104
    %v106 = vsel %vm105, %v98, %v102
    %v107 = vand.u32 2147483647, %v82
    %vm108 = vcmp.eq.f32.partialorder %v107, 8.507059e+37
    %v109 = vand.u32 %v82, 2147483648
    %v110 = vor.u32 1.1754944e-38, %v109
    %v111 = vsel %vm108, %v110, %v106
    %v112 = vmul.f32 1.0, %v111
    %v113 = vld [vmem:[#allocation5] sm:$0xff]
    %v114 = vld [vmem:[#allocation5 + $0x8] sm:$0xff]
    %v115 = vmul.f32 %v97, %v113
    %v116 = vmul.f32 %v112, %v114
    %v117 = vadd.f32 %v97, %v113
    %v118 = vadd.f32 %v112, %v114
    %v119 = vld [vmem:[#allocation7] sm:$0x1]
    %v120 = vadd.f32 %v115, %v116
    %v121 = vrot.slane %v120, 4
    %v122 = vadd.f32 %v120, %v121
    %v123 = vrot.slane %v122, 2
    %v124 = vadd.f32 %v122, %v123
    %v125 = vrot.slane %v124, 1
    %v126 = vadd.f32 %v124, %v125
    %v127 = vadd.f32 %v119, %v126
    %128 = vst [vmem:[#allocation7] sm:$0x1] %v127
    %v129 = vld [vmem:[#allocation8] sm:$0x1]
    %v130 = vadd.f32 %v117, %v118
    %v131 = vrot.slane %v130, 4
    %v132 = vadd.f32 %v130, %v131
    %v133 = vrot.slane %v132, 2
    %v134 = vadd.f32 %v132, %v133
    %v135 = vrot.slane %v134, 1
    %v136 = vadd.f32 %v134, %v135
    %v137 = vadd.f32 %v129, %v136
    %138 = vst [vmem:[#allocation8] sm:$0x1] %v137
    // Predicated region
    $region22: #{tpu_custom_call.1} parent=1 // pred_check
      _
    $region23: #{tpu_custom_call.1} parent=1 // pred_check_branch
      %140 = sbr.rel (0) target = $region25
    $region24: #{tpu_custom_call.1} parent=1 // pred_region
      %142 = vsyncadd [#allocation4], 0
      %s144 = sshll.u32 [#allocation7], 4
      %s145 = int_to_ptr.vmem [resolvable:$true] %s144
      %s146 = sshll.u32 %s2, 4
      %s147 = int_to_ptr.hbm [resolvable:$true] %s146
      %149 = dma.vmem_to_hbm [thread:$0]  %s145, 16, %s147, [#allocation4]
    $region25: #{tpu_custom_call.1} parent=1 // pred_fallthru
      _
    // Predicated region
    $region26: #{tpu_custom_call.1} parent=1 // pred_check
      _
    $region27: #{tpu_custom_call.1} parent=1 // pred_check_branch
      %151 = sbr.rel (0) target = $region29
    $region28: #{tpu_custom_call.1} parent=1 // pred_region
      %153 = vsyncadd [#allocation9], 0
      %s155 = sshll.u32 [#allocation8], 4
      %s156 = int_to_ptr.vmem [resolvable:$true] %s155
      %s157 = sshll.u32 %s3, 4
      %s158 = int_to_ptr.hbm [resolvable:$true] %s157
      %160 = dma.vmem_to_hbm [thread:$0]  %s156, 16, %s158, [#allocation9]
    $region29: #{tpu_custom_call.1} parent=1 // pred_fallthru
      _
    // Predicated region
    $region30: #{tpu_custom_call.1} parent=1 // pred_check
      _
    $region31: #{tpu_custom_call.1} parent=1 // pred_check_branch
      %162 = sbr.rel (0) target = $region33
    $region32: #{tpu_custom_call.1} parent=1 // pred_region
      %164 = dma.done [#allocation4], 16
    $region33: #{tpu_custom_call.1} parent=1 // pred_fallthru
      _
    // Predicated region
    $region34: #{tpu_custom_call.1} parent=1 // pred_check
      _
    $region35: #{tpu_custom_call.1} parent=1 // pred_check_branch
      %166 = sbr.rel (0) target = $region37
    $region36: #{tpu_custom_call.1} parent=1 // pred_region
      %168 = dma.done [#allocation9], 16
    $region37: #{tpu_custom_call.1} parent=1 // pred_fallthru
      _
    %169 = vsyncpa [#allocation3], 1
    %170 = vsyncpa [#allocation6], 1
    %171 = vsyncpa [#allocation4], 1
    %172 = vsyncpa [#allocation9], 1

</llo_original>
